<compile_context>
chip_gen: v5e
topology: v5e:2x2
jax: 0.10.0
libtpu: 0.0.40
codegen_flags: <defaults>
</compile_context>

<pallas_src>
import functools

import jax
import jax.numpy as jnp
from jax.experimental import pallas as pl
from jax.experimental.pallas import tpu as pltpu


def _round_up(x: int, m: int) -> int:
    return ((x + m - 1) // m) * m


def _ffn_kernel(x_ref, g_ref, bta_ref, w1_ref, b1_ref, w2_ref, b2_ref, o_ref,
                xn_ref, acc_ref, *, eps: float, d_valid: int):
    # Grid: (token tiles [parallel], hidden tiles [arbitrary, innermost]).
    # x_ref: (tm, Dp)   g_ref/bta_ref/b2_ref: (1, Dp)
    # w1_ref: (Dp, th)  b1_ref: (1, th)   w2_ref: (th, Dp)
    # o_ref: (tm, Dp)   xn_ref: (tm, Dp) weight dtype   acc_ref: (tm, Dp) f32
    j = pl.program_id(1)

    @pl.when(j == 0)
    def _():
        # LayerNorm once per token tile, f32 statistics over the TRUE dim.
        x = x_ref[...].astype(jnp.float32)
        d_pad = x.shape[-1]
        inv_d = 1.0 / d_valid
        mu = jnp.sum(x, axis=-1, keepdims=True) * inv_d
        xc = x - mu
        if d_pad != d_valid:
            lane = jax.lax.broadcasted_iota(jnp.int32, x.shape, 1)
            xc = jnp.where(lane < d_valid, xc, 0.0)
        var = jnp.sum(xc * xc, axis=-1, keepdims=True) * inv_d
        xn = xc * jax.lax.rsqrt(var + eps)
        xn = xn * g_ref[...].astype(jnp.float32) + bta_ref[...].astype(jnp.float32)
        xn_ref[...] = xn.astype(xn_ref.dtype)
        acc_ref[...] = jnp.zeros_like(acc_ref)

    # Linear1 + ReLU for this hidden tile: MXU in native weight dtype, f32 acc.
    h = jnp.dot(xn_ref[...], w1_ref[...], preferred_element_type=jnp.float32)
    h = jnp.maximum(h + b1_ref[...].astype(jnp.float32), 0.0)
    # TODO(synk): training-mode dropout (p > 0) would use pltpu.prng_seed /
    # pltpu.stateful_bernoulli here; forward-pass / eval dropout is identity.

    # Linear2 partial product for this hidden tile, accumulated in f32.
    acc_ref[...] += jnp.dot(h.astype(w2_ref.dtype), w2_ref[...],
                            preferred_element_type=jnp.float32)

    @pl.when(j == pl.num_programs(1) - 1)
    def _():
        o_ref[...] = (acc_ref[...]
                      + b2_ref[...].astype(jnp.float32)).astype(o_ref.dtype)


def _vmem_bytes(tm, th, d_pad, grid_h, x_isz, w_isz, p_isz):
    """Per-step VMEM footprint estimate (buffers + scratch + f32 temporaries)."""
    nbuf_w = 1 if grid_h == 1 else 2
    b = 0
    b += 2 * tm * d_pad * x_isz                    # x tile (double-buffered)
    b += 2 * tm * d_pad * x_isz                    # out tile (double-buffered)
    b += nbuf_w * (2 * d_pad * th + th) * w_isz    # w1, w2, b1 tiles
    b += 3 * d_pad * p_isz                         # gamma, beta, b2 (single)
    b += tm * d_pad * w_isz                        # xn scratch
    b += tm * d_pad * 4                            # f32 accumulator scratch
    b += tm * d_pad * 4 + 2 * tm * th * 4          # in-kernel f32 temporaries
    return b


def feed_forward(x, gamma, beta, w1, b1, w2, b2, *, eps: float = 1e-5,
                 block_m: int = 512):
    """Pallas implementation of FeedForward.forward (eval / p=0 dropout).

    x: (..., dim); gamma/beta: (dim,); w1: (dim, hidden); b1: (hidden,);
    w2: (hidden, dim); b2: (dim,).  Returns (..., dim), dtype of x.
    """
    orig_shape = x.shape
    d = orig_shape[-1]
    hid = w1.shape[1]
    assert w1.shape == (d, hid) and w2.shape == (hid, d)
    assert gamma.shape == (d,) and beta.shape == (d,)
    assert b1.shape == (hid,) and b2.shape == (d,)

    # Flatten leading dims into one lane-dense token axis.
    x2 = x.reshape(-1, d)
    m = x2.shape[0]

    # Pad model / hidden dims to full 128-lane multiples (lane-dense vregs,
    # unmasked stores, full MXU contraction).  Zero padding keeps the math
    # exact: padded gamma/beta/weights/biases are zero, LN uses the true D.
    d_pad = _round_up(d, 128)
    h_pad = _round_up(hid, 128)
    if d_pad != d:
        x2 = jnp.pad(x2, ((0, 0), (0, d_pad - d)))
        gamma = jnp.pad(gamma, (0, d_pad - d))
        beta = jnp.pad(beta, (0, d_pad - d))
        w1 = jnp.pad(w1, ((0, d_pad - d), (0, 0)))
        w2 = jnp.pad(w2, ((0, 0), (0, d_pad - d)))
        b2 = jnp.pad(b2, (0, d_pad - d))
    if h_pad != hid:
        w1 = jnp.pad(w1, ((0, 0), (0, h_pad - hid)))
        b1 = jnp.pad(b1, (0, h_pad - hid))
        w2 = jnp.pad(w2, ((0, h_pad - hid), (0, 0)))

    x_isz = jnp.dtype(x.dtype).itemsize
    w_isz = jnp.dtype(w1.dtype).itemsize
    p_isz = jnp.dtype(gamma.dtype).itemsize

    try:
        vmem_cap = int(pltpu.get_tpu_info().vmem_capacity_bytes)
    except Exception:  # conservative fallback (v7x per-TC VMEM)
        vmem_cap = 64 * 1024 * 1024
    budget = int(vmem_cap * 0.85)

    # Token tile: prefer block_m (MXU-aligned); keep >= 2 token tiles when
    # possible so both v7x TensorCores get work under "parallel".
    tm = block_m if m >= block_m else _round_up(m, 8)
    if m > 8 and pl.cdiv(m, tm) < 2:
        tm = _round_up(pl.cdiv(m, 2), 8)

    # Hidden tile: largest 128-multiple divisor of h_pad that fits the budget.
    # Full-extent (resident, single-buffered) weights if they fit.
    th_candidates = [h_pad] + [c for c in (4096, 2048, 1024, 512, 256, 128)
                               if c < h_pad and h_pad % c == 0]
    th = th_candidates[-1]
    for cand in th_candidates:
        if _vmem_bytes(tm, cand, d_pad, h_pad // cand,
                       x_isz, w_isz, p_isz) <= budget:
            th = cand
            break
    grid_h = h_pad // th
    # If still over budget, shrink the token tile.
    while (_vmem_bytes(tm, th, d_pad, grid_h, x_isz, w_isz, p_isz) > budget
           and tm > 8):
        tm = max(8, _round_up(tm // 2, 8))
    grid_m = pl.cdiv(m, tm)

    footprint = _vmem_bytes(tm, th, d_pad, grid_h, x_isz, w_isz, p_isz)
    vmem_limit = int(min(max(32 * 1024 * 1024, footprint + (4 << 20)), vmem_cap))

    # Single-buffer operands whose block index never changes.
    const_mode = pl.Buffered(1)
    w_mode = pl.Buffered(1) if grid_h == 1 else pl.Buffered(2)

    # 2-D parameter layouts (keep everything >= 2D for clean TPU layouts).
    g2 = gamma.reshape(1, d_pad)
    bt2 = beta.reshape(1, d_pad)
    b1_2 = b1.reshape(1, h_pad)
    b2_2 = b2.reshape(1, d_pad)

    kernel = functools.partial(_ffn_kernel, eps=eps, d_valid=d)

    out = pl.pallas_call(
        kernel,
        out_shape=jax.ShapeDtypeStruct((m, d_pad), x.dtype),
        grid_spec=pltpu.PrefetchScalarGridSpec(
            num_scalar_prefetch=0,
            grid=(grid_m, grid_h),
            in_specs=[
                pl.BlockSpec((tm, d_pad), lambda i, j: (i, 0)),        # x tile
                pl.BlockSpec((1, d_pad), lambda i, j: (0, 0),
                             pipeline_mode=const_mode),                # gamma
                pl.BlockSpec((1, d_pad), lambda i, j: (0, 0),
                             pipeline_mode=const_mode),                # beta
                pl.BlockSpec((d_pad, th), lambda i, j: (0, j),
                             pipeline_mode=w_mode),                    # w1 tile
                pl.BlockSpec((1, th), lambda i, j: (0, j),
                             pipeline_mode=w_mode),                    # b1 tile
                pl.BlockSpec((th, d_pad), lambda i, j: (j, 0),
                             pipeline_mode=w_mode),                    # w2 tile
                pl.BlockSpec((1, d_pad), lambda i, j: (0, 0),
                             pipeline_mode=const_mode),                # b2
            ],
            out_specs=pl.BlockSpec((tm, d_pad), lambda i, j: (i, 0)),
            scratch_shapes=[
                pltpu.VMEM((tm, d_pad), w1.dtype),      # xn (weight dtype)
                pltpu.VMEM((tm, d_pad), jnp.float32),   # f32 accumulator
            ],
        ),
        compiler_params=pltpu.CompilerParams(
            dimension_semantics=("parallel", "arbitrary"),
            vmem_limit_bytes=vmem_limit,
        ),
        cost_estimate=pl.CostEstimate(
            flops=4 * m * d * hid,
            transcendentals=m,
            bytes_accessed=(2 * m * d * x_isz          # streamed x / out
                            + 2 * d * hid * w_isz      # w1 + w2
                            + (3 * d + hid) * p_isz),  # gamma/beta/b1/b2
        ),
    )(x2, g2, bt2, w1, b1_2, w2, b2_2)

    if d_pad != d:
        out = out[:, :d]
    return out.reshape(orig_shape)


def _feed_forward_ref(x, gamma, beta, w1, b1, w2, b2, eps=1e-5):
    """Pure-JAX reference matching torch LayerNorm/Linear/ReLU semantics."""
    xf = x.astype(jnp.float32)
    mu = jnp.mean(xf, axis=-1, keepdims=True)
    var = jnp.mean((xf - mu) ** 2, axis=-1, keepdims=True)
    xn = (xf - mu) / jnp.sqrt(var + eps) * gamma + beta
    hdn = jnp.maximum(xn @ w1 + b1, 0.0)
    y = hdn @ w2 + b2
    return y.astype(x.dtype)


if __name__ == "__main__":
    key = jax.random.PRNGKey(0)
    k_x, k_g, k_b, k_w1, k_b1, k_w2, k_b2 = jax.random.split(key, 7)

    # Small shapes consistent with the module: batch=2, seq=8, dim=32, hidden=64.
    batch, seq, dim, hidden = 2, 8, 32, 64
    x = jax.random.normal(k_x, (batch, seq, dim), dtype=jnp.float32)
    gamma = 1.0 + 0.1 * jax.random.normal(k_g, (dim,), dtype=jnp.float32)
    beta = 0.1 * jax.random.normal(k_b, (dim,), dtype=jnp.float32)
    w1 = jax.random.normal(k_w1, (dim, hidden), dtype=jnp.float32) / jnp.sqrt(dim)
    b1 = 0.1 * jax.random.normal(k_b1, (hidden,), dtype=jnp.float32)
    w2 = jax.random.normal(k_w2, (hidden, dim), dtype=jnp.float32) / jnp.sqrt(hidden)
    b2 = 0.1 * jax.random.normal(k_b2, (dim,), dtype=jnp.float32)

    out = jax.block_until_ready(feed_forward(x, gamma, beta, w1, b1, w2, b2))
    ref = _feed_forward_ref(x, gamma, beta, w1, b1, w2, b2)

    assert out.shape == (batch, seq, dim)
    assert out.dtype == x.dtype
    assert jnp.allclose(out, ref, atol=1e-4, rtol=1e-4), float(
        jnp.max(jnp.abs(out - ref)))

    print("KERNEL_OK")
</pallas_src>

<mosaic_0001>
module attributes {stable_mosaic.version = 11 : i64} {
  func.func @_ffn_kernel(%arg0: i32, %arg1: i32, %arg2: memref<8x128xf32, #tpu.memory_space<vmem>>, %arg3: memref<1x128xf32, #tpu.memory_space<vmem>>, %arg4: memref<1x128xf32, #tpu.memory_space<vmem>>, %arg5: memref<128x128xf32, #tpu.memory_space<vmem>>, %arg6: memref<1x128xf32, #tpu.memory_space<vmem>>, %arg7: memref<128x128xf32, #tpu.memory_space<vmem>>, %arg8: memref<1x128xf32, #tpu.memory_space<vmem>>, %arg9: memref<8x128xf32, #tpu.memory_space<vmem>>, %arg10: memref<8x128xf32, #tpu.memory_space<vmem>>, %arg11: memref<8x128xf32, #tpu.memory_space<vmem>>) attributes {dimension_semantics = [#tpu.dimension_semantics<parallel>, #tpu.dimension_semantics<arbitrary>], iteration_bounds = array<i64: 2, 1>, scalar_prefetch = 0 : i64, scratch_operands = 2 : i64, tpu.core_type = #tpu.core_type<tc>, window_params = [{transform_indices = @transform_0, window_bounds = array<i64: 8, 128>}, {pipeline_mode = #tpu.pipeline_mode<synchronous>, transform_indices = @transform_1, window_bounds = array<i64: 1, 128>}, {pipeline_mode = #tpu.pipeline_mode<synchronous>, transform_indices = @transform_2, window_bounds = array<i64: 1, 128>}, {pipeline_mode = #tpu.pipeline_mode<synchronous>, transform_indices = @transform_3, window_bounds = array<i64: 128, 128>}, {pipeline_mode = #tpu.pipeline_mode<synchronous>, transform_indices = @transform_4, window_bounds = array<i64: 1, 128>}, {pipeline_mode = #tpu.pipeline_mode<synchronous>, transform_indices = @transform_5, window_bounds = array<i64: 128, 128>}, {pipeline_mode = #tpu.pipeline_mode<synchronous>, transform_indices = @transform_6, window_bounds = array<i64: 1, 128>}, {transform_indices = @transform_7, window_bounds = array<i64: 8, 128>}]} {
    %c0_i32 = arith.constant 0 : i32
    %0 = arith.cmpi eq, %arg1, %c0_i32 : i32
    %1 = arith.extui %0 : i1 to i32
    %c0_i32_0 = arith.constant 0 : i32
    %2 = arith.cmpi ne, %1, %c0_i32_0 : i32
    scf.if %2 {
      %c0_16 = arith.constant 0 : index
      %c0_17 = arith.constant 0 : index
      %19 = vector.load %arg2[%c0_16, %c0_17] : memref<8x128xf32, #tpu.memory_space<vmem>>, vector<8x128xf32>
      %cst_18 = arith.constant dense<0.000000e+00> : vector<8xf32>
      %20 = vector.multi_reduction <add>, %19, %cst_18 [1] : vector<8x128xf32> to vector<8xf32>
      %21 = vector.shape_cast %20 : vector<8xf32> to vector<8x1xf32>
      %cst_19 = arith.constant 3.125000e-02 : f32
      %22 = vector.broadcast %cst_19 : f32 to vector<8x1xf32>
      %23 = arith.mulf %21, %22 : vector<8x1xf32>
      %24 = vector.broadcast %23 : vector<8x1xf32> to vector<8x128xf32>
      %25 = arith.subf %19, %24 : vector<8x128xf32>
      %26 = tpu.iota {dimensions = array<i32: 1>} : vector<8x128xi32>
      %c32_i32 = arith.constant 32 : i32
      %27 = vector.broadcast %c32_i32 : i32 to vector<8x128xi32>
      %28 = arith.cmpi slt, %26, %27 : vector<8x128xi32>
      %cst_20 = arith.constant 0.000000e+00 : f32
      %29 = vector.broadcast %cst_20 : f32 to vector<8x128xf32>
      %30 = arith.select %28, %25, %29 : vector<8x128xi1>, vector<8x128xf32>
      %31 = arith.mulf %30, %30 : vector<8x128xf32>
      %cst_21 = arith.constant dense<0.000000e+00> : vector<8xf32>
      %32 = vector.multi_reduction <add>, %31, %cst_21 [1] : vector<8x128xf32> to vector<8xf32>
      %33 = vector.shape_cast %32 : vector<8xf32> to vector<8x1xf32>
      %cst_22 = arith.constant 3.125000e-02 : f32
      %34 = vector.broadcast %cst_22 : f32 to vector<8x1xf32>
      %35 = arith.mulf %33, %34 : vector<8x1xf32>
      %cst_23 = arith.constant 9.99999974E-6 : f32
      %36 = vector.broadcast %cst_23 : f32 to vector<8x1xf32>
      %37 = arith.addf %35, %36 : vector<8x1xf32>
      %38 = math.rsqrt %37 : vector<8x1xf32>
      %39 = vector.broadcast %38 : vector<8x1xf32> to vector<8x128xf32>
      %40 = arith.mulf %30, %39 : vector<8x128xf32>
      %c0_24 = arith.constant 0 : index
      %c0_25 = arith.constant 0 : index
      %41 = vector.load %arg3[%c0_24, %c0_25] : memref<1x128xf32, #tpu.memory_space<vmem>>, vector<1x128xf32>
      %42 = vector.broadcast %41 : vector<1x128xf32> to vector<8x128xf32>
      %43 = arith.mulf %40, %42 : vector<8x128xf32>
      %c0_26 = arith.constant 0 : index
      %c0_27 = arith.constant 0 : index
      %44 = vector.load %arg4[%c0_26, %c0_27] : memref<1x128xf32, #tpu.memory_space<vmem>>, vector<1x128xf32>
      %45 = vector.broadcast %44 : vector<1x128xf32> to vector<8x128xf32>
      %46 = arith.addf %43, %45 : vector<8x128xf32>
      %c0_28 = arith.constant 0 : index
      %c0_29 = arith.constant 0 : index
      %47 = vector.load %arg10[%c0_28, %c0_29] : memref<8x128xf32, #tpu.memory_space<vmem>>, vector<8x128xf32>
      tpu.vector_store %arg10[%c0_28, %c0_29], %46 {strides = array<i32>} : memref<8x128xf32, #tpu.memory_space<vmem>>, vector<8x128xf32>,
      %cst_30 = arith.constant 0.000000e+00 : f32
      %48 = vector.broadcast %cst_30 : f32 to vector<8x128xf32>
      %c0_31 = arith.constant 0 : index
      %c0_32 = arith.constant 0 : index
      %49 = vector.load %arg11[%c0_31, %c0_32] : memref<8x128xf32, #tpu.memory_space<vmem>>, vector<8x128xf32>
      tpu.vector_store %arg11[%c0_31, %c0_32], %48 {strides = array<i32>} : memref<8x128xf32, #tpu.memory_space<vmem>>, vector<8x128xf32>,
    } else {
    }
    %c0 = arith.constant 0 : index
    %c0_1 = arith.constant 0 : index
    %3 = vector.load %arg10[%c0, %c0_1] : memref<8x128xf32, #tpu.memory_space<vmem>>, vector<8x128xf32>
    %c0_2 = arith.constant 0 : index
    %c0_3 = arith.constant 0 : index
    %4 = vector.load %arg5[%c0_2, %c0_3] : memref<128x128xf32, #tpu.memory_space<vmem>>, vector<128x128xf32>
    %cst = arith.constant dense<0.000000e+00> : vector<8x128xf32>
    %5 = tpu.matmul %3, %4, %cst {dimension_numbers = #tpu.dot_dimension_numbers<[1], [0], [0], [1], [0, 0, 1, 1], [], []>} : vector<8x128xf32>, vector<128x128xf32>, vector<8x128xf32> -> vector<8x128xf32>
    %c0_4 = arith.constant 0 : index
    %c0_5 = arith.constant 0 : index
    %6 = vector.load %arg6[%c0_4, %c0_5] : memref<1x128xf32, #tpu.memory_space<vmem>>, vector<1x128xf32>
    %7 = vector.broadcast %6 : vector<1x128xf32> to vector<8x128xf32>
    %8 = arith.addf %5, %7 : vector<8x128xf32>
    %cst_6 = arith.constant 0.000000e+00 : f32
    %9 = vector.broadcast %cst_6 : f32 to vector<8x128xf32>
    %10 = arith.maximumf %8, %9 : vector<8x128xf32>
    %c0_7 = arith.constant 0 : index
    %c0_8 = arith.constant 0 : index
    %11 = vector.load %arg11[%c0_7, %c0_8] : memref<8x128xf32, #tpu.memory_space<vmem>>, vector<8x128xf32>
    %c0_9 = arith.constant 0 : index
    %c0_10 = arith.constant 0 : index
    %12 = vector.load %arg7[%c0_9, %c0_10] : memref<128x128xf32, #tpu.memory_space<vmem>>, vector<128x128xf32>
    %cst_11 = arith.constant dense<0.000000e+00> : vector<8x128xf32>
    %13 = tpu.matmul %10, %12, %cst_11 {dimension_numbers = #tpu.dot_dimension_numbers<[1], [0], [0], [1], [0, 0, 1, 1], [], []>} : vector<8x128xf32>, vector<128x128xf32>, vector<8x128xf32> -> vector<8x128xf32>
    %14 = arith.addf %11, %13 : vector<8x128xf32>
    %c0_12 = arith.constant 0 : index
    %c0_13 = arith.constant 0 : index
    %15 = vector.load %arg11[%c0_12, %c0_13] : memref<8x128xf32, #tpu.memory_space<vmem>>, vector<8x128xf32>
    tpu.vector_store %arg11[%c0_12, %c0_13], %14 {strides = array<i32>} : memref<8x128xf32, #tpu.memory_space<vmem>>, vector<8x128xf32>,
    %c0_i32_14 = arith.constant 0 : i32
    %16 = arith.cmpi eq, %arg1, %c0_i32_14 : i32
    %17 = arith.extui %16 : i1 to i32
    %c0_i32_15 = arith.constant 0 : i32
    %18 = arith.cmpi ne, %17, %c0_i32_15 : i32
    scf.if %18 {
      %c0_16 = arith.constant 0 : index
      %c0_17 = arith.constant 0 : index
      %19 = vector.load %arg11[%c0_16, %c0_17] : memref<8x128xf32, #tpu.memory_space<vmem>>, vector<8x128xf32>
      %c0_18 = arith.constant 0 : index
      %c0_19 = arith.constant 0 : index
      %20 = vector.load %arg8[%c0_18, %c0_19] : memref<1x128xf32, #tpu.memory_space<vmem>>, vector<1x128xf32>
      %21 = vector.broadcast %20 : vector<1x128xf32> to vector<8x128xf32>
      %22 = arith.addf %19, %21 : vector<8x128xf32>
      %c0_20 = arith.constant 0 : index
      %c0_21 = arith.constant 0 : index
      %23 = vector.load %arg9[%c0_20, %c0_21] : memref<8x128xf32, #tpu.memory_space<vmem>>, vector<8x128xf32>
      tpu.vector_store %arg9[%c0_20, %c0_21], %22 {strides = array<i32>} : memref<8x128xf32, #tpu.memory_space<vmem>>, vector<8x128xf32>,
    } else {
    }
    return
  }
  func.func @transform_0(%arg0: i32, %arg1: i32) -> (i32, i32) {
    %c0_i32 = arith.constant 0 : i32
    %c0_i32_0 = arith.constant 0 : i32
    return %arg0, %c0_i32 : i32, i32
  }
  func.func @transform_1(%arg0: i32, %arg1: i32) -> (i32, i32) {
    %c0_i32 = arith.constant 0 : i32
    %c0_i32_0 = arith.constant 0 : i32
    %c0_i32_1 = arith.constant 0 : i32
    return %c0_i32, %c0_i32_0 : i32, i32
  }
  func.func @transform_2(%arg0: i32, %arg1: i32) -> (i32, i32) {
    %c0_i32 = arith.constant 0 : i32
    %c0_i32_0 = arith.constant 0 : i32
    %c0_i32_1 = arith.constant 0 : i32
    return %c0_i32, %c0_i32_0 : i32, i32
  }
  func.func @transform_3(%arg0: i32, %arg1: i32) -> (i32, i32) {
    %c0_i32 = arith.constant 0 : i32
    %c0_i32_0 = arith.constant 0 : i32
    return %c0_i32, %arg1 : i32, i32
  }
  func.func @transform_4(%arg0: i32, %arg1: i32) -> (i32, i32) {
    %c0_i32 = arith.constant 0 : i32
    %c0_i32_0 = arith.constant 0 : i32
    return %c0_i32, %arg1 : i32, i32
  }
  func.func @transform_5(%arg0: i32, %arg1: i32) -> (i32, i32) {
    %c0_i32 = arith.constant 0 : i32
    %c0_i32_0 = arith.constant 0 : i32
    return %arg1, %c0_i32 : i32, i32
  }
  func.func @transform_6(%arg0: i32, %arg1: i32) -> (i32, i32) {
    %c0_i32 = arith.constant 0 : i32
    %c0_i32_0 = arith.constant 0 : i32
    %c0_i32_1 = arith.constant 0 : i32
    return %c0_i32, %c0_i32_0 : i32, i32
  }
  func.func @transform_7(%arg0: i32, %arg1: i32) -> (i32, i32) {
    %c0_i32 = arith.constant 0 : i32
    %c0_i32_0 = arith.constant 0 : i32
    return %arg0, %c0_i32 : i32, i32
  }
}

</mosaic_0001>

<llo_original>
// kernel: tpu_custom_call.1
$region0: #{tpu_custom_call.1}
  #allocation0 [shape = 'u32[]', space=smem, size = 0x4, offset = 0x4, fixed_abs, tag = 'smem constant byte address 0x4 - core index']
  #allocation1 [shape = 'u32[72,128]{1,0:T(1,128)}', space=vmem, size = 0x9000, scoped, tag = 'internal scratch']
  #allocation2 [shape = 'f32[8,128]{1,0:T(8,128)}', space=vmem, size = 0x1000, scoped, tag = 'scratch operand']
  #allocation3 [shape = 'f32[8,128]{1,0:T(8,128)}', space=vmem, size = 0x1000, scoped, tag = 'scratch operand']
  %s0 = inlined_call_operand.hbm [shape: f32[16,128], index: 0, kind: input, shape index: {}]
  %s1 = inlined_call_operand.hbm [shape: f32[1,128], index: 1, kind: input, shape index: {}]
  %s2 = inlined_call_operand.vmem [shape: f32[1,128], index: 2, kind: input, shape index: {}]
  %s3 = inlined_call_operand.hbm [shape: f32[128,128], index: 3, kind: input, shape index: {}]
  %s4 = inlined_call_operand.vmem [shape: f32[1,128], index: 4, kind: input, shape index: {}]
  %s5 = inlined_call_operand.hbm [shape: f32[128,128], index: 5, kind: input, shape index: {}]
  %s6 = inlined_call_operand.vmem [shape: f32[1,128], index: 6, kind: input, shape index: {}]
  %s7 = inlined_call_operand.hbm [shape: f32[16,128], index: 7, kind: output, shape index: {}]
  %s8 = sld [smem:[#allocation0]]
  $region85: #{tpu_custom_call.1} parent=0
    _
  %s10 = ssub.s32 1, %s8
  %s11 = scalar_select 0, %s10, %s8
  $region1: #{tpu_custom_call.1} parent=0
    #allocation4 [shape = 'u8[8192]{0}', space=vmem, size = 0x2000, scoped, tag = 'input window, operand 0']
    #allocation5 [shape = 's32[2]{0}', space=sflag, size = 0x8, scoped, tag = 'scoped memory for tpu_custom_call.1']
    #allocation6 [shape = 's32[2]{0}', space=sflag, size = 0x8, scoped, tag = 'scoped memory for tpu_custom_call.1']
    #allocation7 [shape = 'u8[512]{0}', space=vmem, size = 0x400, scoped, tag = 'input window, operand 1, single buffered']
    #allocation8 [shape = 's32[1]{0}', space=sflag, size = 0x4, scoped, tag = 'scoped memory for tpu_custom_call.1']
    #allocation9 [shape = 'u8[65536]{0}', space=vmem, size = 0x10000, scoped, tag = 'input window, operand 3, single buffered']
    #allocation10 [shape = 'u8[65536]{0}', space=vmem, size = 0x10000, scoped, tag = 'input window, operand 5, single buffered']
    #allocation11 [shape = 's32[1]{0}', space=sflag, size = 0x4, scoped, tag = 'scoped memory for tpu_custom_call.1']
    #allocation12 [shape = 'u8[8192]{0}', space=vmem, size = 0x2000, scoped, tag = 'output window, operand 0']
    %12 = vsyncpa [#allocation5], 0
    %s13 = scalar_lea.sflag [#allocation5], 1
    %14 = vsyncpa %s13, 0
    %15 = vsyncpa [#allocation8], 0
    %16 = vsyncpa [#allocation11], 0
    %17 = vsyncpa [#allocation6], 0
    %s18 = scalar_lea.sflag [#allocation6], 1
    %19 = vsyncpa %s18, 0
    loop: start=0, step=1, limit=4
    $region2: #{tpu_custom_call.1} parent=1 // loop_pre_header
      _
    $region3: #{tpu_custom_call.1} parent=1 // loop_header
      %s21 = sphi 0, %s25
      %p22 = scmp.ge.s32.totalorder %s21, 4
      %s28 = sphi 0, %s40
      %s29 = sphi 0, %s36
      %s30 = sphi 0, %s28
      %s31 = sphi 0, %s29
      %s32 = sphi 0, %s30
      %s33 = sphi 0, %s31
      %s43 = sphi 0, %s45
      %s46 = sphi 0, %s43
      %s47 = sphi 0, %s46
      %s63 = sphi 0, %s47
      %s67 = sphi 0, %s67
      %s69 = sphi 0, %s67
      %s70 = sphi 0, %s69
      %s84 = sphi 0, %s70
      %s88 = sphi 0, %s88
      %s90 = sphi 0, %s88
      %s91 = sphi 0, %s90
      %s105 = sphi 0, %s91
      %s111 = sphi 0, %s113
      %s114 = sphi 0, %s111
      %s115 = sphi 0, %s114
      %s131 = sphi 0, %s115
      %s137 = sphi 0, %s139
      %s140 = sphi 0, %s137
      %s141 = sphi 0, %s140
      %s157 = sphi 0, %s141
      %s163 = sphi 0, %s165
      %s166 = sphi 0, %s163
      %s167 = sphi 0, %s166
      %s183 = sphi 0, %s167
      %s187 = sphi 0, %s187
      %s189 = sphi 0, %s187
      %s190 = sphi 0, %s189
      %s204 = sphi 0, %s190
      %s210 = sphi 0, %s212
      %s213 = sphi 0, %s210
      %s214 = sphi 0, %s213
      %s230 = sphi 0, %s214
    $region4: #{tpu_custom_call.1} parent=1 // loop_header_branch
      %24 = sbr.rel (%p22) target = $region8
    $region5: #{tpu_custom_call.1} parent=1 // loop_body
      %s26 = ssub.s32 %s21, 1
      %s27 = ssub.s32 %s21, 2
      %s34 = sadd.s32 1, %s29
      %p35 = scmp.ge.s32.totalorder %s34, 1
      %s36 = scalar_select %p35, 0, %s34
      %s37 = sadd.s32 1, %s28
      %s38 = scalar_select %p35, %s37, %s28
      %p39 = scmp.ge.s32.totalorder %s38, 2
      %s40 = scalar_select %p39, 0, %s38
      %s41 = ssub.s32 %s28, %s40
      %p42 = scmp.eq.s32.totalorder %s41, 0
      %s44 = sadd.s32 %s43, 1
      %s45 = scalar_select %p42, %s43, %s44
      %p48 = pneg %p42
      %p49 = scmp.eq.s32.totalorder %s21, 1
      %p50 = por %p48, %p49
      %p51 = scmp.ne.s32.totalorder %s43, %s46
      %p52 = scmp.eq.s32.totalorder %s21, 0
      %p53 = por %p51, %p52
      %p54 = scmp.ne.s32.totalorder %s43, %s46
      %p55 = scmp.eq.s32.totalorder %s26, 1
      %p56 = por %p54, %p55
      %p57 = scmp.ne.s32.totalorder %s46, %s47
      %p58 = scmp.eq.s32.totalorder %s26, 0
      %p59 = por %p57, %p58
      %p60 = scmp.ne.s32.totalorder %s46, %s47
      %p61 = scmp.eq.s32.totalorder %s27, 1
      %p62 = por %p60, %p61
      %p64 = scmp.ne.s32.totalorder %s47, %s63
      %p65 = scmp.eq.s32.totalorder %s27, 0
      %p66 = por %p64, %p65
      %s68 = sadd.s32 %s67, 1
      %p71 = scmp.eq.s32.totalorder %s21, 1
      %p72 = scmp.ne.s32.totalorder %s67, %s69
      %p73 = scmp.eq.s32.totalorder %s21, 0
      %p74 = por %p72, %p73
      %p75 = scmp.ne.s32.totalorder %s67, %s69
      %p76 = scmp.eq.s32.totalorder %s26, 1
      %p77 = por %p75, %p76
      %p78 = scmp.ne.s32.totalorder %s69, %s70
      %p79 = scmp.eq.s32.totalorder %s26, 0
      %p80 = por %p78, %p79
      %p81 = scmp.ne.s32.totalorder %s69, %s70
      %p82 = scmp.eq.s32.totalorder %s27, 1
      %p83 = por %p81, %p82
      %p85 = scmp.ne.s32.totalorder %s70, %s84
      %p86 = scmp.eq.s32.totalorder %s27, 0
      %p87 = por %p85, %p86
      %s89 = sadd.s32 %s88, 1
      %p92 = scmp.eq.s32.totalorder %s21, 1
      %p93 = scmp.ne.s32.totalorder %s88, %s90
      %p94 = scmp.eq.s32.totalorder %s21, 0
      %p95 = por %p93, %p94
      %p96 = scmp.ne.s32.totalorder %s88, %s90
      %p97 = scmp.eq.s32.totalorder %s26, 1
      %p98 = por %p96, %p97
      %p99 = scmp.ne.s32.totalorder %s90, %s91
      %p100 = scmp.eq.s32.totalorder %s26, 0
      %p101 = por %p99, %p100
      %p102 = scmp.ne.s32.totalorder %s90, %s91
      %p103 = scmp.eq.s32.totalorder %s27, 1
      %p104 = por %p102, %p103
      %p106 = scmp.ne.s32.totalorder %s91, %s105
      %p107 = scmp.eq.s32.totalorder %s27, 0
      %p108 = por %p106, %p107
      %s109 = ssub.s32 %s29, %s36
      %p110 = scmp.eq.s32.totalorder %s109, 0
      %s112 = sadd.s32 %s111, 1
      %s113 = scalar_select %p110, %s111, %s112
      %p116 = pneg %p110
      %p117 = scmp.eq.s32.totalorder %s21, 1
      %p118 = por %p116, %p117
      %p119 = scmp.ne.s32.totalorder %s111, %s114
      %p120 = scmp.eq.s32.totalorder %s21, 0
      %p121 = por %p119, %p120
      %p122 = scmp.ne.s32.totalorder %s111, %s114
      %p123 = scmp.eq.s32.totalorder %s26, 1
      %p124 = por %p122, %p123
      %p125 = scmp.ne.s32.totalorder %s114, %s115
      %p126 = scmp.eq.s32.totalorder %s26, 0
      %p127 = por %p125, %p126
      %p128 = scmp.ne.s32.totalorder %s114, %s115
      %p129 = scmp.eq.s32.totalorder %s27, 1
      %p130 = por %p128, %p129
      %p132 = scmp.ne.s32.totalorder %s115, %s131
      %p133 = scmp.eq.s32.totalorder %s27, 0
      %p134 = por %p132, %p133
      %s135 = ssub.s32 %s29, %s36
      %p136 = scmp.eq.s32.totalorder %s135, 0
      %s138 = sadd.s32 %s137, 1
      %s139 = scalar_select %p136, %s137, %s138
      %p142 = pneg %p136
      %p143 = scmp.eq.s32.totalorder %s21, 1
      %p144 = por %p142, %p143
      %p145 = scmp.ne.s32.totalorder %s137, %s140
      %p146 = scmp.eq.s32.totalorder %s21, 0
      %p147 = por %p145, %p146
      %p148 = scmp.ne.s32.totalorder %s137, %s140
      %p149 = scmp.eq.s32.totalorder %s26, 1
      %p150 = por %p148, %p149
      %p151 = scmp.ne.s32.totalorder %s140, %s141
      %p152 = scmp.eq.s32.totalorder %s26, 0
      %p153 = por %p151, %p152
      %p154 = scmp.ne.s32.totalorder %s140, %s141
      %p155 = scmp.eq.s32.totalorder %s27, 1
      %p156 = por %p154, %p155
      %p158 = scmp.ne.s32.totalorder %s141, %s157
      %p159 = scmp.eq.s32.totalorder %s27, 0
      %p160 = por %p158, %p159
      %s161 = ssub.s32 %s29, %s36
      %p162 = scmp.eq.s32.totalorder %s161, 0
      %s164 = sadd.s32 %s163, 1
      %s165 = scalar_select %p162, %s163, %s164
      %p168 = pneg %p162
      %p169 = scmp.eq.s32.totalorder %s21, 1
      %p170 = por %p168, %p169
      %p171 = scmp.ne.s32.totalorder %s163, %s166
      %p172 = scmp.eq.s32.totalorder %s21, 0
      %p173 = por %p171, %p172
      %p174 = scmp.ne.s32.totalorder %s163, %s166
      %p175 = scmp.eq.s32.totalorder %s26, 1
      %p176 = por %p174, %p175
      %p177 = scmp.ne.s32.totalorder %s166, %s167
      %p178 = scmp.eq.s32.totalorder %s26, 0
      %p179 = por %p177, %p178
      %p180 = scmp.ne.s32.totalorder %s166, %s167
      %p181 = scmp.eq.s32.totalorder %s27, 1
      %p182 = por %p180, %p181
      %p184 = scmp.ne.s32.totalorder %s167, %s183
      %p185 = scmp.eq.s32.totalorder %s27, 0
      %p186 = por %p184, %p185
      %s188 = sadd.s32 %s187, 1
      %p191 = scmp.eq.s32.totalorder %s21, 1
      %p192 = scmp.ne.s32.totalorder %s187, %s189
      %p193 = scmp.eq.s32.totalorder %s21, 0
      %p194 = por %p192, %p193
      %p195 = scmp.ne.s32.totalorder %s187, %s189
      %p196 = scmp.eq.s32.totalorder %s26, 1
      %p197 = por %p195, %p196
      %p198 = scmp.ne.s32.totalorder %s189, %s190
      %p199 = scmp.eq.s32.totalorder %s26, 0
      %p200 = por %p198, %p199
      %p201 = scmp.ne.s32.totalorder %s189, %s190
      %p202 = scmp.eq.s32.totalorder %s27, 1
      %p203 = por %p201, %p202
      %p205 = scmp.ne.s32.totalorder %s190, %s204
      %p206 = scmp.eq.s32.totalorder %s27, 0
      %p207 = por %p205, %p206
      %s208 = ssub.s32 %s28, %s40
      %p209 = scmp.eq.s32.totalorder %s208, 0
      %s211 = sadd.s32 %s210, 1
      %s212 = scalar_select %p209, %s210, %s211
      %p215 = pneg %p209
      %p216 = scmp.eq.s32.totalorder %s21, 1
      %p217 = por %p215, %p216
      %p218 = scmp.ne.s32.totalorder %s210, %s213
      %p219 = scmp.eq.s32.totalorder %s21, 0
      %p220 = por %p218, %p219
      %p221 = scmp.ne.s32.totalorder %s210, %s213
      %p222 = scmp.eq.s32.totalorder %s26, 1
      %p223 = por %p221, %p222
      %p224 = scmp.ne.s32.totalorder %s213, %s214
      %p225 = scmp.eq.s32.totalorder %s26, 0
      %p226 = por %p224, %p225
      %p227 = scmp.ne.s32.totalorder %s213, %s214
      %p228 = scmp.eq.s32.totalorder %s27, 1
      %p229 = por %p227, %p228
      %p231 = scmp.ne.s32.totalorder %s214, %s230
      %p232 = scmp.eq.s32.totalorder %s27, 0
      %p233 = por %p231, %p232
      %p234 = scmp.le.s32.totalorder 1, %s21
      %p235 = scmp.lt.s32.totalorder %s21, 3
      %p236 = pnand %p234, %p235
      %p237 = pneg %p236
      // Predicated region
      $region9: #{tpu_custom_call.1} parent=5 // pred_check
        _
      $region10: #{tpu_custom_call.1} parent=5 // pred_check_branch
        %239 = sbr.rel (%p236) target = $region12
      $region11: #{tpu_custom_call.1} parent=5 // pred_region
        %s240 = ssub.s32 %s21, 1
        // Predicated region
        $region13: #{tpu_custom_call.1} parent=11 // pred_check
          %p241 = pneg %p80
        $region14: #{tpu_custom_call.1} parent=11 // pred_check_branch
          %243 = sbr.rel (%p241) target = $region16
        $region15: #{tpu_custom_call.1} parent=11 // pred_region
          %245 = vsyncadd [#allocation8], 0
          %s247 = sshll.u32 %s1, 4
          %s248 = int_to_ptr.hbm [resolvable:$true] %s247
          %s249 = sshll.u32 [#allocation7], 4
          %s250 = int_to_ptr.vmem [resolvable:$true] %s249
          %252 = dma.hbm_to_vmem [thread:$0]  %s248, 16, %s250, [#allocation8]
        $region16: #{tpu_custom_call.1} parent=11 // pred_fallthru
          _
        // Predicated region
        $region17: #{tpu_custom_call.1} parent=11 // pred_check
          %p253 = pneg %p101
        $region18: #{tpu_custom_call.1} parent=11 // pred_check_branch
          %255 = sbr.rel (%p253) target = $region20
        $region19: #{tpu_custom_call.1} parent=11 // pred_region
          _
        $region20: #{tpu_custom_call.1} parent=11 // pred_fallthru
          _
        // Predicated region
        $region21: #{tpu_custom_call.1} parent=11 // pred_check
          %p256 = pneg %p127
        $region22: #{tpu_custom_call.1} parent=11 // pred_check_branch
          %258 = sbr.rel (%p256) target = $region24
        $region23: #{tpu_custom_call.1} parent=11 // pred_region
          %260 = vsyncadd [#allocation8], 0
          %s261 = smul.addr %s31, 8
          %s262 = scalar_lea.hbm %s3, %s261
          %s263 = sshll.u32 %s262, 4
          %s264 = int_to_ptr.hbm [resolvable:$true] %s263
          %s265 = sshll.u32 [#allocation9], 4
          %s266 = int_to_ptr.vmem [resolvable:$true] %s265
          %271 = dma.hbm_to_vmem [thread:$0]  %s264, 2048, %s266, [#allocation8], 128, 128, 8
        $region24: #{tpu_custom_call.1} parent=11 // pred_fallthru
          _
        // Predicated region
        $region25: #{tpu_custom_call.1} parent=11 // pred_check
          %p272 = pneg %p153
        $region26: #{tpu_custom_call.1} parent=11 // pred_check_branch
          %274 = sbr.rel (%p272) target = $region28
        $region27: #{tpu_custom_call.1} parent=11 // pred_region
          %p275 = scmp.lt.s32.totalorder %s31, 0
          %s276 = scalar_select %p275, %s31, 0
          %s277 = scalar_lea.vmem %s4, %s276
        $region28: #{tpu_custom_call.1} parent=11 // pred_fallthru
          _
        // Predicated region
        $region29: #{tpu_custom_call.1} parent=11 // pred_check
          %p278 = pneg %p179
        $region30: #{tpu_custom_call.1} parent=11 // pred_check_branch
          %280 = sbr.rel (%p278) target = $region32
        $region31: #{tpu_custom_call.1} parent=11 // pred_region
          %s281 = smul.u32 16, %s31
          %283 = vsyncadd [#allocation11], 0
          %s284 = smul.addr %s281, 8
          %s285 = scalar_lea.hbm %s5, %s284
          %s286 = sshll.u32 %s285, 4
          %s287 = int_to_ptr.hbm [resolvable:$true] %s286
          %s288 = sshll.u32 [#allocation10], 4
          %s289 = int_to_ptr.vmem [resolvable:$true] %s288
          %294 = dma.hbm_to_vmem [thread:$0]  %s287, 2048, %s289, [#allocation11], 128, 128, 8
        $region32: #{tpu_custom_call.1} parent=11 // pred_fallthru
          _
        // Predicated region
        $region33: #{tpu_custom_call.1} parent=11 // pred_check
          %p295 = pneg %p200
        $region34: #{tpu_custom_call.1} parent=11 // pred_check_branch
          %297 = sbr.rel (%p295) target = $region36
        $region35: #{tpu_custom_call.1} parent=11 // pred_region
          _
        $region36: #{tpu_custom_call.1} parent=11 // pred_fallthru
          _
      $region12: #{tpu_custom_call.1} parent=5 // pred_fallthru
        _
      %p298 = scmp.lt.s32.totalorder %s21, 2
      // Predicated region
      $region37: #{tpu_custom_call.1} parent=5 // pred_check
        %p299 = pneg %p298
      $region38: #{tpu_custom_call.1} parent=5 // pred_check_branch
        %301 = sbr.rel (%p299) target = $region40
      $region39: #{tpu_custom_call.1} parent=5 // pred_region
        // Predicated region
        $region41: #{tpu_custom_call.1} parent=39 // pred_check
          %p302 = pneg %p53
        $region42: #{tpu_custom_call.1} parent=39 // pred_check_branch
          %304 = sbr.rel (%p302) target = $region44
        $region43: #{tpu_custom_call.1} parent=39 // pred_region
          %s305 = sand.u32 %s43, 1
          %s306 = scalar_lea.sflag [#allocation5], %s305
          %s307 = sand.u32 %s43, 1
          %s308 = smul.addr %s307, 8
          %s309 = scalar_lea.vmem [#allocation4], %s308
          %311 = vsyncadd %s306, 0
          %s312 = smul.addr %s28, 8
          %s313 = scalar_lea.hbm %s0, %s312
          %s315 = sshll.u32 %s313, 4
          %s316 = int_to_ptr.hbm [resolvable:$true] %s315
          %s317 = sshll.u32 %s309, 4
          %s318 = int_to_ptr.vmem [resolvable:$true] %s317
          %320 = dma.hbm_to_vmem [thread:$0]  %s316, 128, %s318, %s306
        $region44: #{tpu_custom_call.1} parent=39 // pred_fallthru
          _
      $region40: #{tpu_custom_call.1} parent=5 // pred_fallthru
        _
      %p321 = scmp.le.s32.totalorder 1, %s21
      %p322 = scmp.lt.s32.totalorder %s21, 3
      %p323 = pnand %p321, %p322
      %p324 = pneg %p323
      // Predicated region
      $region45: #{tpu_custom_call.1} parent=5 // pred_check
        _
      $region46: #{tpu_custom_call.1} parent=5 // pred_check_branch
        %326 = sbr.rel (%p323) target = $region48
      $region47: #{tpu_custom_call.1} parent=5 // pred_region
        %s327 = ssub.s32 %s21, 1
        %s328 = sand.u32 %s46, 1
        %s329 = scalar_lea.sflag [#allocation5], %s328
        %s330 = sand.u32 %s46, 1
        %s331 = smul.addr %s330, 8
        %s332 = scalar_lea.vmem [#allocation4], %s331
        // Predicated region
        $region49: #{tpu_custom_call.1} parent=47 // pred_check
          %p333 = pneg %p59
        $region50: #{tpu_custom_call.1} parent=47 // pred_check_branch
          %335 = sbr.rel (%p333) target = $region52
        $region51: #{tpu_custom_call.1} parent=47 // pred_region
          %337 = dma.done %s329, 128
        $region52: #{tpu_custom_call.1} parent=47 // pred_fallthru
          _
        // Predicated region
        $region53: #{tpu_custom_call.1} parent=47 // pred_check
          %p338 = pneg %p80
        $region54: #{tpu_custom_call.1} parent=47 // pred_check_branch
          %340 = sbr.rel (%p338) target = $region56
        $region55: #{tpu_custom_call.1} parent=47 // pred_region
          %342 = dma.done [#allocation8], 16
        $region56: #{tpu_custom_call.1} parent=47 // pred_fallthru
          _
        // Predicated region
        $region57: #{tpu_custom_call.1} parent=47 // pred_check
          %p343 = pneg %p127
        $region58: #{tpu_custom_call.1} parent=47 // pred_check_branch
          %345 = sbr.rel (%p343) target = $region60
        $region59: #{tpu_custom_call.1} parent=47 // pred_region
          %347 = dma.done [#allocation8], 2048
        $region60: #{tpu_custom_call.1} parent=47 // pred_fallthru
          _
        // Predicated region
        $region61: #{tpu_custom_call.1} parent=47 // pred_check
          %p348 = pneg %p179
        $region62: #{tpu_custom_call.1} parent=47 // pred_check_branch
          %350 = sbr.rel (%p348) target = $region64
        $region63: #{tpu_custom_call.1} parent=47 // pred_region
          %352 = dma.done [#allocation11], 2048
        $region64: #{tpu_custom_call.1} parent=47 // pred_fallthru
          _
        %s353 = sand.u32 %s46, 1
        %s354 = scalar_lea.sflag [#allocation5], %s353
        %s355 = sand.u32 %s46, 1
        %s356 = smul.addr %s355, 8
        %s357 = scalar_lea.vmem [#allocation4], %s356
        %p358 = pneg %p59
        %p359 = pneg %p56
        %p360 = pneg %p80
        %p361 = pneg %p77
        %p362 = pneg %p101
        %p363 = pneg %p98
        %p364 = pneg %p127
        %p365 = pneg %p124
        %p366 = scmp.lt.s32.totalorder %s31, 0
        %s367 = scalar_select %p366, %s31, 0
        %s368 = scalar_lea.vmem %s4, %s367
        %p369 = pneg %p153
        %p370 = pneg %p150
        %p371 = pneg %p179
        %p372 = pneg %p176
        %p373 = pneg %p200
        %p374 = pneg %p197
        %p375 = pneg %p226
        %p376 = pneg %p223
        %s377 = sand.u32 %s213, 1
        %s378 = scalar_lea.sflag [#allocation6], %s377
        %s379 = sand.u32 %s213, 1
        %s380 = smul.addr %s379, 8
        %s381 = scalar_lea.vmem [#allocation12], %s380
        %p382 = scmp.lt.s32.totalorder %s31, 0
        %s383 = scalar_select %p382, %s31, 0
        %s384 = scalar_lea.vmem %s4, %s383
        %s385 = smul.u32 16, %s31
        %p386 = scmp.eq.s32.totalorder %s31, 0
        // Predicated region
        $region65: #{tpu_custom_call.1} parent=47 // pred_check
          %p387 = pneg %p386
        $region66: #{tpu_custom_call.1} parent=47 // pred_check_branch
          %389 = sbr.rel (%p387) target = $region68
        $region67: #{tpu_custom_call.1} parent=47 // pred_region
          %v390 = vld [vmem:[%s332] sm:$0xff]
          %391 = vadd.xlane.f32.xlu0 %v390
          %v392 = vpop.xlane.xlu0 %391
          %v393 = vmul.f32 %v392, 0.03125
          %v394 = vsub.f32 %v390, %v393
          %v395 = vlaneseq
          %v396 = vand.u32 %v395, 127
          %vm397 = vcmp.lt.s32.totalorder %v396, 32
          %v398 = vsel %vm397, %v394, 0.0
          %v399 = vmul.f32 %v398, %v398
          %400 = vadd.xlane.f32.xlu0 %v399
          %v401 = vpop.xlane.xlu0 %400
          %v402 = vmul.f32 %v401, 0.03125
          %v403 = vadd.f32 %v402, 1e-05
          %v404 = vrsqrt.pop %v403
          %v405 = vmul.f32 %v404, %v403
          %v406 = vmul.f32 %v405, %v404
          %v407 = vmul.f32 0.5, %v406
          %v408 = vsub.f32 1.5, %v407
          %v409 = vmul.f32 %v404, %v408
          %vm410 = vweird.f32 %v403
          %vm411 = vweird.f32 %v404
          %vm412 = vmor %vm410, %vm411
          %v413 = vsel %vm412, %v404, %v409
          %v414 = vmul.f32 %v398, %v413
          %v415 = vld [vmem:[#allocation7] sm:$0x1]
          %v417 = vperm.slane %v415, 0
          %v419 = vmul.f32 %v414, %v417
          %v420 = vld [vmem:[%s2] sm:$0x1]
          %v422 = vperm.slane %v420, 0
          %v424 = vadd.f32 %v419, %v422
          %425 = vst [vmem:[#allocation2] sm:$0xff] %v424
          %426 = vst [vmem:[#allocation3] sm:$0xff] 0.0
        $region68: #{tpu_custom_call.1} parent=47 // pred_fallthru
          _
        %v427 = vld [vmem:[#allocation2] sm:$0xff]
        %v428 = vld [vmem:[#allocation9] sm:$0xff]
        %v429 = vld [vmem:[#allocation9 + $0x8] sm:$0xff]
        %v430 = vld [vmem:[#allocation9 + $0x10] sm:$0xff]
        %v431 = vld [vmem:[#allocation9 + $0x18] sm:$0xff]
        %v432 = vld [vmem:[#allocation9 + $0x20] sm:$0xff]
        %v433 = vld [vmem:[#allocation9 + $0x28] sm:$0xff]
        %v434 = vld [vmem:[#allocation9 + $0x30] sm:$0xff]
        %v435 = vld [vmem:[#allocation9 + $0x38] sm:$0xff]
        %v436 = vld [vmem:[#allocation9 + $0x40] sm:$0xff]
        %v437 = vld [vmem:[#allocation9 + $0x48] sm:$0xff]
        %v438 = vld [vmem:[#allocation9 + $0x50] sm:$0xff]
        %v439 = vld [vmem:[#allocation9 + $0x58] sm:$0xff]
        %v440 = vld [vmem:[#allocation9 + $0x60] sm:$0xff]
        %v441 = vld [vmem:[#allocation9 + $0x68] sm:$0xff]
        %v442 = vld [vmem:[#allocation9 + $0x70] sm:$0xff]
        %v443 = vld [vmem:[#allocation9 + $0x78] sm:$0xff]
        %v444 = vld [vmem:[%s384] sm:$0x1]
        %v446 = vperm.slane %v444, 0
        %448 = vmatpush.msra.mxu0 %v443
        %449 = vmatpush.msra.mxu0 %v442
        %450 = vmatpush.msra.mxu0 %v441
        %451 = vmatpush.msra.mxu0 %v440
        %452 = vmatpush.msra.mxu0 %v439
        %453 = vmatpush.msra.mxu0 %v438
        %454 = vmatpush.msra.mxu0 %v437
        %455 = vmatpush.msra.mxu0 %v436
        %456 = vmatpush.msra.mxu0 %v435
        %457 = vmatpush.msra.mxu0 %v434
        %458 = vmatpush.msra.mxu0 %v433
        %459 = vmatpush.msra.mxu0 %v432
        %460 = vmatpush.msra.mxu0 %v431
        %461 = vmatpush.msra.mxu0 %v430
        %462 = vmatpush.msra.mxu0 %v429
        %463 = vmatpush.msra.mxu0 %v428
        %464 = vmatmul.f32.gmra.mxu0 %v427
        %v465 = vpop.f32.mrf.mxu0
        %v466 = vadd.f32 %v446, %v465
        %467 = vdwg.mxu0
        %v468 = vmax.f32 %v466, 0.0
        %v469 = vld [vmem:[#allocation3] sm:$0xff]
        %v470 = vld [vmem:[#allocation10] sm:$0xff]
        %v471 = vld [vmem:[#allocation10 + $0x8] sm:$0xff]
        %v472 = vld [vmem:[#allocation10 + $0x10] sm:$0xff]
        %v473 = vld [vmem:[#allocation10 + $0x18] sm:$0xff]
        %v474 = vld [vmem:[#allocation10 + $0x20] sm:$0xff]
        %v475 = vld [vmem:[#allocation10 + $0x28] sm:$0xff]
        %v476 = vld [vmem:[#allocation10 + $0x30] sm:$0xff]
        %v477 = vld [vmem:[#allocation10 + $0x38] sm:$0xff]
        %v478 = vld [vmem:[#allocation10 + $0x40] sm:$0xff]
        %v479 = vld [vmem:[#allocation10 + $0x48] sm:$0xff]
        %v480 = vld [vmem:[#allocation10 + $0x50] sm:$0xff]
        %v481 = vld [vmem:[#allocation10 + $0x58] sm:$0xff]
        %v482 = vld [vmem:[#allocation10 + $0x60] sm:$0xff]
        %v483 = vld [vmem:[#allocation10 + $0x68] sm:$0xff]
        %v484 = vld [vmem:[#allocation10 + $0x70] sm:$0xff]
        %v485 = vld [vmem:[#allocation10 + $0x78] sm:$0xff]
        %486 = vmatpush.msra.mxu0 %v485
        %487 = vmatpush.msra.mxu0 %v484
        %488 = vmatpush.msra.mxu0 %v483
        %489 = vmatpush.msra.mxu0 %v482
        %490 = vmatpush.msra.mxu0 %v481
        %491 = vmatpush.msra.mxu0 %v480
        %492 = vmatpush.msra.mxu0 %v479
        %493 = vmatpush.msra.mxu0 %v478
        %494 = vmatpush.msra.mxu0 %v477
        %495 = vmatpush.msra.mxu0 %v476
        %496 = vmatpush.msra.mxu0 %v475
        %497 = vmatpush.msra.mxu0 %v474
        %498 = vmatpush.msra.mxu0 %v473
        %499 = vmatpush.msra.mxu0 %v472
        %500 = vmatpush.msra.mxu0 %v471
        %501 = vmatpush.msra.mxu0 %v470
        %502 = vmatmul.f32.gmra.mxu0 %v468
        %v503 = vpop.f32.mrf.mxu0
        %v504 = vadd.f32 0.0, %v503
        %505 = vdwg.mxu0
        %v506 = vadd.f32 %v469, %v504
        %507 = vst [vmem:[#allocation3] sm:$0xff] %v506
        // Predicated region
        $region69: #{tpu_custom_call.1} parent=47 // pred_check
          %p508 = pneg %p386
        $region70: #{tpu_custom_call.1} parent=47 // pred_check_branch
          %510 = sbr.rel (%p508) target = $region72
        $region71: #{tpu_custom_call.1} parent=47 // pred_region
          %v511 = vld [vmem:[#allocation3] sm:$0xff]
          %v512 = vld [vmem:[%s6] sm:$0x1]
          %v514 = vperm.slane %v512, 0
          %v516 = vadd.f32 %v511, %v514
          %517 = vst [vmem:[%s381] sm:$0xff] %v516
        $region72: #{tpu_custom_call.1} parent=47 // pred_fallthru
          _
        %s518 = sand.u32 %s213, 1
        %s519 = scalar_lea.sflag [#allocation6], %s518
        %s520 = sand.u32 %s213, 1
        %s521 = smul.addr %s520, 8
        %s522 = scalar_lea.vmem [#allocation12], %s521
        // Predicated region
        $region73: #{tpu_custom_call.1} parent=47 // pred_check
          %p523 = pneg %p223
        $region74: #{tpu_custom_call.1} parent=47 // pred_check_branch
          %525 = sbr.rel (%p523) target = $region76
        $region75: #{tpu_custom_call.1} parent=47 // pred_region
          %527 = vsyncadd %s519, 0
          %s528 = smul.addr %s30, 8
          %s529 = scalar_lea.hbm %s7, %s528
          %s531 = sshll.u32 %s522, 4
          %s532 = int_to_ptr.vmem [resolvable:$true] %s531
          %s533 = sshll.u32 %s529, 4
          %s534 = int_to_ptr.hbm [resolvable:$true] %s533
          %536 = dma.vmem_to_hbm [thread:$0]  %s532, 128, %s534, %s519
        $region76: #{tpu_custom_call.1} parent=47 // pred_fallthru
          _
      $region48: #{tpu_custom_call.1} parent=5 // pred_fallthru
        _
      %p537 = scmp.le.s32.totalorder 2, %s21
      // Predicated region
      $region77: #{tpu_custom_call.1} parent=5 // pred_check
        %p538 = pneg %p537
      $region78: #{tpu_custom_call.1} parent=5 // pred_check_branch
        %540 = sbr.rel (%p538) target = $region80
      $region79: #{tpu_custom_call.1} parent=5 // pred_region
        %s541 = ssub.s32 %s21, 2
        // Predicated region
        $region81: #{tpu_custom_call.1} parent=79 // pred_check
          %p542 = pneg %p229
        $region82: #{tpu_custom_call.1} parent=79 // pred_check_branch
          %544 = sbr.rel (%p542) target = $region84
        $region83: #{tpu_custom_call.1} parent=79 // pred_region
          %s545 = sand.u32 %s214, 1
          %s546 = scalar_lea.sflag [#allocation6], %s545
          %s547 = sand.u32 %s214, 1
          %s548 = smul.addr %s547, 8
          %s549 = scalar_lea.vmem [#allocation12], %s548
          %551 = dma.done %s546, 128
        $region84: #{tpu_custom_call.1} parent=79 // pred_fallthru
          _
      $region80: #{tpu_custom_call.1} parent=5 // pred_fallthru
        _
    $region6: #{tpu_custom_call.1} parent=1 // loop_footer
      %s25 = sadd.s32 1, %s21
    $region7: #{tpu_custom_call.1} parent=1 // loop_footer_branch
      %20 = sbr.rel target = $region3
    $region8: #{tpu_custom_call.1} parent=1 // loop_exit
      _
    %552 = vsyncpa [#allocation5], 1
    %s553 = scalar_lea.sflag [#allocation5], 1
    %554 = vsyncpa %s553, 1
    %555 = vsyncpa [#allocation8], 1
    %556 = vsyncpa [#allocation11], 1
    %557 = vsyncpa [#allocation6], 1
    %s558 = scalar_lea.sflag [#allocation6], 1
    %559 = vsyncpa %s558, 1

</llo_original>
